<compile_context>
chip_gen: v7x
topology: tpu7x:2x2x1
jax: 0.10.0
libtpu: 0.0.40
codegen_flags: <defaults>
</compile_context>

<pallas_src>
import functools

import jax
import jax.numpy as jnp
from jax.experimental import pallas as pl
from jax.experimental.pallas import tpu as pltpu

NUM_ACTIVITIES = 19       # stand-in for len(activities_names)
IN_FEATURES = 300         # 6 sensors * 50 downsampled timesteps
H1 = 200
H2 = 100

# Padded (MXU / lane friendly) sizes.
IN_PAD = 384              # 300 -> 3*128
H1_PAD = 256              # 200 -> 256 (full v6e/v7x MXU tile)
H2_PAD = 128              # 100 -> 128
OUT_PAD = 128             # 19  -> 128 (lane-dense output stores)


def mlp_kernel(x_ref, w1_ref, b1_ref, w2_ref, b2_ref, w3_ref, b3_ref, o_ref):
    """Fused 3-layer MLP on one batch tile. bf16 operands, f32 accumulate."""
    x = x_ref[...]                                                        # (TB, 384) bf16
    h1 = jnp.dot(x, w1_ref[...], preferred_element_type=jnp.float32)      # (TB, 256) f32
    h1 = jnp.maximum(h1 + b1_ref[...], 0.0)                               # bias + ReLU (f32)
    h2 = jnp.dot(h1.astype(jnp.bfloat16), w2_ref[...],
                 preferred_element_type=jnp.float32)                      # (TB, 128) f32
    h2 = jnp.maximum(h2 + b2_ref[...], 0.0)
    logits = jnp.dot(h2.astype(jnp.bfloat16), w3_ref[...],
                     preferred_element_type=jnp.float32)                  # (TB, 128) f32
    o_ref[...] = logits + b3_ref[...]


def init_params(key):
    """PyTorch-style nn.Linear init (U(-1/sqrt(fan_in), 1/sqrt(fan_in))),
    materialized as (in, out) matrices, then zero-padded to MXU-friendly
    shapes. Zero padding keeps the math identical to the unpadded network."""
    k1, k2, k3, k4, k5, k6 = jax.random.split(key, 6)

    def uniform(k, shape, fan_in):
        bound = 1.0 / jnp.sqrt(jnp.float32(fan_in))
        return jax.random.uniform(k, shape, jnp.float32, -bound, bound)

    w1 = uniform(k1, (IN_FEATURES, H1), IN_FEATURES)
    b1 = uniform(k2, (1, H1), IN_FEATURES)
    w2 = uniform(k3, (H1, H2), H1)
    b2 = uniform(k4, (1, H2), H1)
    w3 = uniform(k5, (H2, NUM_ACTIVITIES), H2)
    b3 = uniform(k6, (1, NUM_ACTIVITIES), H2)

    def pad(a, rows, cols):
        return jnp.pad(a, ((0, rows - a.shape[0]), (0, cols - a.shape[1])))

    params_padded = (
        pad(w1, IN_PAD, H1_PAD).astype(jnp.bfloat16),
        pad(b1, 1, H1_PAD).astype(jnp.float32),
        pad(w2, H1_PAD, H2_PAD).astype(jnp.bfloat16),
        pad(b2, 1, H2_PAD).astype(jnp.float32),
        pad(w3, H2_PAD, OUT_PAD).astype(jnp.bfloat16),
        pad(b3, 1, OUT_PAD).astype(jnp.float32),
    )
    params_raw = (w1, b1, w2, b2, w3, b3)
    return params_padded, params_raw


@jax.jit
def sensor_nn_forward(x, params_padded):
    """Forward pass equivalent to SensorNeuralNetwork.forward (logits)."""
    w1, b1, w2, b2, w3, b3 = params_padded
    B = x.shape[0]

    # nn.Flatten() + feature padding 300 -> 384, cast to bf16 for the MXU.
    x_flat = x.reshape(B, -1).astype(jnp.float32)
    x_flat = jnp.pad(x_flat, ((0, 0), (0, IN_PAD - x_flat.shape[1])))

    # Batch tile: large for throughput, but never larger than the (padded) batch.
    TB = 512 if B >= 512 else max(8, ((B + 7) // 8) * 8)
    B_pad = ((B + TB - 1) // TB) * TB
    x_flat = jnp.pad(x_flat, ((0, B_pad - B), (0, 0))).astype(jnp.bfloat16)

    grid = (B_pad // TB,)

    flops = 2 * B_pad * (IN_PAD * H1_PAD + H1_PAD * H2_PAD + H2_PAD * OUT_PAD)
    bytes_accessed = (
        B_pad * IN_PAD * 2 + B_pad * OUT_PAD * 4 +
        (IN_PAD * H1_PAD + H1_PAD * H2_PAD + H2_PAD * OUT_PAD) * 2 +
        (H1_PAD + H2_PAD + OUT_PAD) * 4
    )

    out_padded = pl.pallas_call(
        mlp_kernel,
        out_shape=jax.ShapeDtypeStruct((B_pad, OUT_PAD), jnp.float32),
        grid=grid,
        in_specs=[
            pl.BlockSpec((TB, IN_PAD), lambda i: (i, 0)),        # x: tiled over batch
            pl.BlockSpec((IN_PAD, H1_PAD), lambda i: (0, 0)),    # weights/biases:
            pl.BlockSpec((1, H1_PAD), lambda i: (0, 0)),         #   resident across
            pl.BlockSpec((H1_PAD, H2_PAD), lambda i: (0, 0)),    #   grid steps
            pl.BlockSpec((1, H2_PAD), lambda i: (0, 0)),
            pl.BlockSpec((H2_PAD, OUT_PAD), lambda i: (0, 0)),
            pl.BlockSpec((1, OUT_PAD), lambda i: (0, 0)),
        ],
        out_specs=pl.BlockSpec((TB, OUT_PAD), lambda i: (i, 0)),
        compiler_params=pltpu.CompilerParams(
            dimension_semantics=("parallel",),        # megacore split on v7x
            vmem_limit_bytes=64 * 1024 * 1024,
        ),
        cost_estimate=pl.CostEstimate(
            flops=flops, transcendentals=0, bytes_accessed=bytes_accessed),
    )(x_flat, w1, b1, w2, b2, w3, b3)

    # Drop batch padding and the padded logit columns.
    return out_padded[:B, :NUM_ACTIVITIES]


def reference_forward_f32(x, params_raw):
    """Pure f32 reference matching the PyTorch module exactly."""
    w1, b1, w2, b2, w3, b3 = params_raw
    xf = x.reshape(x.shape[0], -1).astype(jnp.float32)
    h1 = jnp.maximum(xf @ w1 + b1, 0.0)
    h2 = jnp.maximum(h1 @ w2 + b2, 0.0)
    return h2 @ w3 + b3


def reference_forward_bf16(x, params_raw):
    """Reference mirroring the kernel's bf16-operand / f32-accumulate math."""
    w1, b1, w2, b2, w3, b3 = params_raw
    xf = x.reshape(x.shape[0], -1).astype(jnp.bfloat16)
    h1 = jnp.maximum(
        jnp.dot(xf, w1.astype(jnp.bfloat16),
                preferred_element_type=jnp.float32) + b1, 0.0)
    h2 = jnp.maximum(
        jnp.dot(h1.astype(jnp.bfloat16), w2.astype(jnp.bfloat16),
                preferred_element_type=jnp.float32) + b2, 0.0)
    return jnp.dot(h2.astype(jnp.bfloat16), w3.astype(jnp.bfloat16),
                   preferred_element_type=jnp.float32) + b3


if __name__ == "__main__":
    key = jax.random.PRNGKey(0)
    kx, kp = jax.random.split(key)

    # Small example batch: 8 samples, 6 sensors, 50 downsampled timesteps.
    x = jax.random.normal(kx, (8, 6, 50), dtype=jnp.float32)
    params_padded, params_raw = init_params(kp)

    out = sensor_nn_forward(x, params_padded)
    out = jax.block_until_ready(out)

    assert out.shape == (8, NUM_ACTIVITIES)

    # Tight check vs a reference using the same bf16-operand math.
    ref_bf16 = reference_forward_bf16(x, params_raw)
    assert jnp.allclose(out, ref_bf16, atol=1e-3, rtol=1e-3)

    # Loose check vs the exact f32 PyTorch-equivalent math (bf16 rounding noise).
    ref_f32 = reference_forward_f32(x, params_raw)
    assert jnp.allclose(out, ref_f32, atol=5e-2, rtol=5e-2)

    print("KERNEL_OK")
</pallas_src>

<mosaic_0001>
module attributes {stable_mosaic.version = 11 : i64} {
  func.func @mlp_kernel(%arg0: i32, %arg1: memref<8x384xbf16, #tpu.memory_space<vmem>>, %arg2: memref<384x256xbf16, #tpu.memory_space<vmem>>, %arg3: memref<1x256xf32, #tpu.memory_space<vmem>>, %arg4: memref<256x128xbf16, #tpu.memory_space<vmem>>, %arg5: memref<1x128xf32, #tpu.memory_space<vmem>>, %arg6: memref<128x128xbf16, #tpu.memory_space<vmem>>, %arg7: memref<1x128xf32, #tpu.memory_space<vmem>>, %arg8: memref<8x128xf32, #tpu.memory_space<vmem>>) attributes {dimension_semantics = [#tpu.dimension_semantics<parallel>], iteration_bounds = array<i64: 1>, scalar_prefetch = 0 : i64, scratch_operands = 0 : i64, tpu.core_type = #tpu.core_type<tc>, window_params = [{transform_indices = @transform_0, window_bounds = array<i64: 8, 384>}, {pipeline_mode = #tpu.pipeline_mode<synchronous>, transform_indices = @transform_1, window_bounds = array<i64: 384, 256>}, {pipeline_mode = #tpu.pipeline_mode<synchronous>, transform_indices = @transform_2, window_bounds = array<i64: 1, 256>}, {pipeline_mode = #tpu.pipeline_mode<synchronous>, transform_indices = @transform_3, window_bounds = array<i64: 256, 128>}, {pipeline_mode = #tpu.pipeline_mode<synchronous>, transform_indices = @transform_4, window_bounds = array<i64: 1, 128>}, {pipeline_mode = #tpu.pipeline_mode<synchronous>, transform_indices = @transform_5, window_bounds = array<i64: 128, 128>}, {pipeline_mode = #tpu.pipeline_mode<synchronous>, transform_indices = @transform_6, window_bounds = array<i64: 1, 128>}, {transform_indices = @transform_7, window_bounds = array<i64: 8, 128>}]} {
    %c0 = arith.constant 0 : index
    %c0_0 = arith.constant 0 : index
    %0 = vector.load %arg1[%c0, %c0_0] : memref<8x384xbf16, #tpu.memory_space<vmem>>, vector<8x384xbf16>
    %c0_1 = arith.constant 0 : index
    %c0_2 = arith.constant 0 : index
    %1 = vector.load %arg2[%c0_1, %c0_2] : memref<384x256xbf16, #tpu.memory_space<vmem>>, vector<384x256xbf16>
    %cst = arith.constant dense<0.000000e+00> : vector<8x256xf32>
    %2 = tpu.matmul %0, %1, %cst {dimension_numbers = #tpu.dot_dimension_numbers<[1], [0], [0], [1], [0, 0, 1, 1], [], []>} : vector<8x384xbf16>, vector<384x256xbf16>, vector<8x256xf32> -> vector<8x256xf32>
    %c0_3 = arith.constant 0 : index
    %c0_4 = arith.constant 0 : index
    %3 = vector.load %arg3[%c0_3, %c0_4] : memref<1x256xf32, #tpu.memory_space<vmem>>, vector<1x256xf32>
    %4 = vector.broadcast %3 : vector<1x256xf32> to vector<8x256xf32>
    %5 = arith.addf %2, %4 : vector<8x256xf32>
    %cst_5 = arith.constant 0.000000e+00 : f32
    %6 = vector.broadcast %cst_5 : f32 to vector<8x256xf32>
    %7 = arith.maximumf %5, %6 : vector<8x256xf32>
    %8 = arith.truncf %7 : vector<8x256xf32> to vector<8x256xbf16>
    %c0_6 = arith.constant 0 : index
    %c0_7 = arith.constant 0 : index
    %9 = vector.load %arg4[%c0_6, %c0_7] : memref<256x128xbf16, #tpu.memory_space<vmem>>, vector<256x128xbf16>
    %cst_8 = arith.constant dense<0.000000e+00> : vector<8x128xf32>
    %10 = tpu.matmul %8, %9, %cst_8 {dimension_numbers = #tpu.dot_dimension_numbers<[1], [0], [0], [1], [0, 0, 1, 1], [], []>} : vector<8x256xbf16>, vector<256x128xbf16>, vector<8x128xf32> -> vector<8x128xf32>
    %c0_9 = arith.constant 0 : index
    %c0_10 = arith.constant 0 : index
    %11 = vector.load %arg5[%c0_9, %c0_10] : memref<1x128xf32, #tpu.memory_space<vmem>>, vector<1x128xf32>
    %12 = vector.broadcast %11 : vector<1x128xf32> to vector<8x128xf32>
    %13 = arith.addf %10, %12 : vector<8x128xf32>
    %cst_11 = arith.constant 0.000000e+00 : f32
    %14 = vector.broadcast %cst_11 : f32 to vector<8x128xf32>
    %15 = arith.maximumf %13, %14 : vector<8x128xf32>
    %16 = arith.truncf %15 : vector<8x128xf32> to vector<8x128xbf16>
    %c0_12 = arith.constant 0 : index
    %c0_13 = arith.constant 0 : index
    %17 = vector.load %arg6[%c0_12, %c0_13] : memref<128x128xbf16, #tpu.memory_space<vmem>>, vector<128x128xbf16>
    %cst_14 = arith.constant dense<0.000000e+00> : vector<8x128xf32>
    %18 = tpu.matmul %16, %17, %cst_14 {dimension_numbers = #tpu.dot_dimension_numbers<[1], [0], [0], [1], [0, 0, 1, 1], [], []>} : vector<8x128xbf16>, vector<128x128xbf16>, vector<8x128xf32> -> vector<8x128xf32>
    %c0_15 = arith.constant 0 : index
    %c0_16 = arith.constant 0 : index
    %19 = vector.load %arg7[%c0_15, %c0_16] : memref<1x128xf32, #tpu.memory_space<vmem>>, vector<1x128xf32>
    %20 = vector.broadcast %19 : vector<1x128xf32> to vector<8x128xf32>
    %21 = arith.addf %18, %20 : vector<8x128xf32>
    %c0_17 = arith.constant 0 : index
    %c0_18 = arith.constant 0 : index
    %22 = vector.load %arg8[%c0_17, %c0_18] : memref<8x128xf32, #tpu.memory_space<vmem>>, vector<8x128xf32>
    tpu.vector_store %arg8[%c0_17, %c0_18], %21 {strides = array<i32>} : memref<8x128xf32, #tpu.memory_space<vmem>>, vector<8x128xf32>,
    return
  }
  func.func @transform_0(%arg0: i32) -> (i32, i32) {
    %c0_i32 = arith.constant 0 : i32
    %c0_i32_0 = arith.constant 0 : i32
    return %arg0, %c0_i32 : i32, i32
  }
  func.func @transform_1(%arg0: i32) -> (i32, i32) {
    %c0_i32 = arith.constant 0 : i32
    %c0_i32_0 = arith.constant 0 : i32
    %c0_i32_1 = arith.constant 0 : i32
    return %c0_i32, %c0_i32_0 : i32, i32
  }
  func.func @transform_2(%arg0: i32) -> (i32, i32) {
    %c0_i32 = arith.constant 0 : i32
    %c0_i32_0 = arith.constant 0 : i32
    %c0_i32_1 = arith.constant 0 : i32
    return %c0_i32, %c0_i32_0 : i32, i32
  }
  func.func @transform_3(%arg0: i32) -> (i32, i32) {
    %c0_i32 = arith.constant 0 : i32
    %c0_i32_0 = arith.constant 0 : i32
    %c0_i32_1 = arith.constant 0 : i32
    return %c0_i32, %c0_i32_0 : i32, i32
  }
  func.func @transform_4(%arg0: i32) -> (i32, i32) {
    %c0_i32 = arith.constant 0 : i32
    %c0_i32_0 = arith.constant 0 : i32
    %c0_i32_1 = arith.constant 0 : i32
    return %c0_i32, %c0_i32_0 : i32, i32
  }
  func.func @transform_5(%arg0: i32) -> (i32, i32) {
    %c0_i32 = arith.constant 0 : i32
    %c0_i32_0 = arith.constant 0 : i32
    %c0_i32_1 = arith.constant 0 : i32
    return %c0_i32, %c0_i32_0 : i32, i32
  }
  func.func @transform_6(%arg0: i32) -> (i32, i32) {
    %c0_i32 = arith.constant 0 : i32
    %c0_i32_0 = arith.constant 0 : i32
    %c0_i32_1 = arith.constant 0 : i32
    return %c0_i32, %c0_i32_0 : i32, i32
  }
  func.func @transform_7(%arg0: i32) -> (i32, i32) {
    %c0_i32 = arith.constant 0 : i32
    %c0_i32_0 = arith.constant 0 : i32
    return %arg0, %c0_i32 : i32, i32
  }
}

</mosaic_0001>

<llo_original>
// kernel: sensor_nn_forward.1
$region0: #{sensor_nn_forward.1}
  #allocation0 [shape = 'u32[]', space=smem, size = 0x4, offset = 0x4, fixed_abs, tag = 'smem constant byte address 0x4 - core index']
  #allocation1 [shape = 'u32[144,128]{1,0:T(1,128)}', space=vmem, size = 0x12000, scoped, tag = 'internal scratch']
  %s0 = inlined_call_operand.hbm [shape: bf16[8,384], index: 0, kind: input, shape index: {}]
  %s1 = inlined_call_operand.hbm [shape: bf16[384,256], index: 1, kind: input, shape index: {}]
  %s2 = inlined_call_operand.hbm [shape: f32[1,256], index: 2, kind: input, shape index: {}]
  %s3 = inlined_call_operand.hbm [shape: bf16[256,128], index: 3, kind: input, shape index: {}]
  %s4 = inlined_call_operand.hbm [shape: f32[1,128], index: 4, kind: input, shape index: {}]
  %s5 = inlined_call_operand.hbm [shape: bf16[128,128], index: 5, kind: input, shape index: {}]
  %s6 = inlined_call_operand.hbm [shape: f32[1,128], index: 6, kind: input, shape index: {}]
  %s7 = inlined_call_operand.hbm [shape: f32[8,128], index: 7, kind: output, shape index: {}]
  %s8 = sld [smem:[#allocation0]]
  $region66: #{sensor_nn_forward.1} parent=0
    _
  %s10 = ssub.s32 1, %s8
  %s11 = scalar_select 0, %s10, %s8
  $region1: #{sensor_nn_forward.1} parent=0
    #allocation2 [shape = 'u8[6144]{0}', space=vmem, size = 0x1800, scoped, tag = 'input window, operand 0, single buffered']
    #allocation3 [shape = 's32[1]{0}', space=sflag, size = 0x4, scoped, tag = 'scoped memory for sensor_nn_forward.1']
    #allocation4 [shape = 's32[1]{0}', space=sflag, size = 0x4, scoped, tag = 'scoped memory for sensor_nn_forward.1']
    #allocation5 [shape = 'u8[196608]{0}', space=vmem, size = 0x30000, scoped, tag = 'input window, operand 1, single buffered']
    #allocation6 [shape = 's32[1]{0}', space=sflag, size = 0x4, scoped, tag = 'scoped memory for sensor_nn_forward.1']
    #allocation7 [shape = 'u8[1024]{0}', space=vmem, size = 0x400, scoped, tag = 'input window, operand 2, single buffered']
    #allocation8 [shape = 'u8[65536]{0}', space=vmem, size = 0x10000, scoped, tag = 'input window, operand 3, single buffered']
    #allocation9 [shape = 's32[1]{0}', space=sflag, size = 0x4, scoped, tag = 'scoped memory for sensor_nn_forward.1']
    #allocation10 [shape = 'u8[512]{0}', space=vmem, size = 0x400, scoped, tag = 'input window, operand 4, single buffered']
    #allocation11 [shape = 'u8[32768]{0}', space=vmem, size = 0x8000, scoped, tag = 'input window, operand 5, single buffered']
    #allocation12 [shape = 's32[1]{0}', space=sflag, size = 0x4, scoped, tag = 'scoped memory for sensor_nn_forward.1']
    #allocation13 [shape = 'u8[512]{0}', space=vmem, size = 0x400, scoped, tag = 'input window, operand 6, single buffered']
    #allocation14 [shape = 'u8[4096]{0}', space=vmem, size = 0x1000, scoped, tag = 'output window, operand 0, single buffered']
    %12 = vsyncpa [#allocation3], 0
    %13 = vsyncpa [#allocation6], 0
    %14 = vsyncpa [#allocation9], 0
    %15 = vsyncpa [#allocation12], 0
    %16 = vsyncpa [#allocation4], 0
    // Predicated region
    $region2: #{sensor_nn_forward.1} parent=1 // pred_check
      _
    $region3: #{sensor_nn_forward.1} parent=1 // pred_check_branch
      %18 = sbr.rel (0) target = $region5
    $region4: #{sensor_nn_forward.1} parent=1 // pred_region
      %s20 = ssub.s32 192, 192
      %21 = vsyncadd [#allocation3], %s20
      %s23 = sshll.u32 [#allocation2], 4
      %s24 = int_to_ptr.vmem [resolvable:$true] %s23
      %26 = dma.hbm_to_vmem [thread:$0]  %s0, 192, %s24, [#allocation3]
    $region5: #{sensor_nn_forward.1} parent=1 // pred_fallthru
      _
    // Predicated region
    $region6: #{sensor_nn_forward.1} parent=1 // pred_check
      _
    $region7: #{sensor_nn_forward.1} parent=1 // pred_check_branch
      %28 = sbr.rel (0) target = $region9
    $region8: #{sensor_nn_forward.1} parent=1 // pred_region
      %s30 = ssub.s32 6144, 6144
      %31 = vsyncadd [#allocation6], %s30
      %s32 = sshll.u32 [#allocation5], 4
      %s33 = int_to_ptr.vmem [resolvable:$true] %s32
      %38 = dma.hbm_to_vmem [thread:$0]  %s1, 6144, %s33, [#allocation6], 128, 128, 8
    $region9: #{sensor_nn_forward.1} parent=1 // pred_fallthru
      _
    // Predicated region
    $region10: #{sensor_nn_forward.1} parent=1 // pred_check
      _
    $region11: #{sensor_nn_forward.1} parent=1 // pred_check_branch
      %40 = sbr.rel (0) target = $region13
    $region12: #{sensor_nn_forward.1} parent=1 // pred_region
      %s42 = ssub.s32 32, 32
      %43 = vsyncadd [#allocation6], %s42
      %s45 = sshll.u32 [#allocation7], 4
      %s46 = int_to_ptr.vmem [resolvable:$true] %s45
      %48 = dma.hbm_to_vmem [thread:$0]  %s2, 32, %s46, [#allocation6]
    $region13: #{sensor_nn_forward.1} parent=1 // pred_fallthru
      _
    // Predicated region
    $region14: #{sensor_nn_forward.1} parent=1 // pred_check
      _
    $region15: #{sensor_nn_forward.1} parent=1 // pred_check_branch
      %50 = sbr.rel (0) target = $region17
    $region16: #{sensor_nn_forward.1} parent=1 // pred_region
      %s52 = ssub.s32 2048, 2048
      %53 = vsyncadd [#allocation9], %s52
      %s54 = sshll.u32 [#allocation8], 4
      %s55 = int_to_ptr.vmem [resolvable:$true] %s54
      %60 = dma.hbm_to_vmem [thread:$0]  %s3, 2048, %s55, [#allocation9], 64, 64, 4
    $region17: #{sensor_nn_forward.1} parent=1 // pred_fallthru
      _
    // Predicated region
    $region18: #{sensor_nn_forward.1} parent=1 // pred_check
      _
    $region19: #{sensor_nn_forward.1} parent=1 // pred_check_branch
      %62 = sbr.rel (0) target = $region21
    $region20: #{sensor_nn_forward.1} parent=1 // pred_region
      %s64 = ssub.s32 16, 16
      %65 = vsyncadd [#allocation9], %s64
      %s67 = sshll.u32 [#allocation10], 4
      %s68 = int_to_ptr.vmem [resolvable:$true] %s67
      %70 = dma.hbm_to_vmem [thread:$0]  %s4, 16, %s68, [#allocation9]
    $region21: #{sensor_nn_forward.1} parent=1 // pred_fallthru
      _
    // Predicated region
    $region22: #{sensor_nn_forward.1} parent=1 // pred_check
      _
    $region23: #{sensor_nn_forward.1} parent=1 // pred_check_branch
      %72 = sbr.rel (0) target = $region25
    $region24: #{sensor_nn_forward.1} parent=1 // pred_region
      %s74 = ssub.s32 1024, 1024
      %75 = vsyncadd [#allocation12], %s74
      %s76 = sshll.u32 [#allocation11], 4
      %s77 = int_to_ptr.vmem [resolvable:$true] %s76
      %82 = dma.hbm_to_vmem [thread:$0]  %s5, 1024, %s77, [#allocation12], 64, 64, 4
    $region25: #{sensor_nn_forward.1} parent=1 // pred_fallthru
      _
    // Predicated region
    $region26: #{sensor_nn_forward.1} parent=1 // pred_check
      _
    $region27: #{sensor_nn_forward.1} parent=1 // pred_check_branch
      %84 = sbr.rel (0) target = $region29
    $region28: #{sensor_nn_forward.1} parent=1 // pred_region
      %s86 = ssub.s32 16, 16
      %87 = vsyncadd [#allocation12], %s86
      %s89 = sshll.u32 [#allocation13], 4
      %s90 = int_to_ptr.vmem [resolvable:$true] %s89
      %92 = dma.hbm_to_vmem [thread:$0]  %s6, 16, %s90, [#allocation12]
    $region29: #{sensor_nn_forward.1} parent=1 // pred_fallthru
      _
    // Predicated region
    $region30: #{sensor_nn_forward.1} parent=1 // pred_check
      _
    $region31: #{sensor_nn_forward.1} parent=1 // pred_check_branch
      %94 = sbr.rel (0) target = $region33
    $region32: #{sensor_nn_forward.1} parent=1 // pred_region
      %95 = dma.done [#allocation3], 192
    $region33: #{sensor_nn_forward.1} parent=1 // pred_fallthru
      _
    // Predicated region
    $region34: #{sensor_nn_forward.1} parent=1 // pred_check
      _
    $region35: #{sensor_nn_forward.1} parent=1 // pred_check_branch
      %97 = sbr.rel (0) target = $region37
    $region36: #{sensor_nn_forward.1} parent=1 // pred_region
      %98 = dma.done [#allocation6], 6144
    $region37: #{sensor_nn_forward.1} parent=1 // pred_fallthru
      _
    // Predicated region
    $region38: #{sensor_nn_forward.1} parent=1 // pred_check
      _
    $region39: #{sensor_nn_forward.1} parent=1 // pred_check_branch
      %100 = sbr.rel (0) target = $region41
    $region40: #{sensor_nn_forward.1} parent=1 // pred_region
      %101 = dma.done [#allocation6], 32
    $region41: #{sensor_nn_forward.1} parent=1 // pred_fallthru
      _
    // Predicated region
    $region42: #{sensor_nn_forward.1} parent=1 // pred_check
      _
    $region43: #{sensor_nn_forward.1} parent=1 // pred_check_branch
      %103 = sbr.rel (0) target = $region45
    $region44: #{sensor_nn_forward.1} parent=1 // pred_region
      %104 = dma.done [#allocation9], 2048
    $region45: #{sensor_nn_forward.1} parent=1 // pred_fallthru
      _
    // Predicated region
    $region46: #{sensor_nn_forward.1} parent=1 // pred_check
      _
    $region47: #{sensor_nn_forward.1} parent=1 // pred_check_branch
      %106 = sbr.rel (0) target = $region49
    $region48: #{sensor_nn_forward.1} parent=1 // pred_region
      %107 = dma.done [#allocation9], 16
    $region49: #{sensor_nn_forward.1} parent=1 // pred_fallthru
      _
    // Predicated region
    $region50: #{sensor_nn_forward.1} parent=1 // pred_check
      _
    $region51: #{sensor_nn_forward.1} parent=1 // pred_check_branch
      %109 = sbr.rel (0) target = $region53
    $region52: #{sensor_nn_forward.1} parent=1 // pred_region
      %110 = dma.done [#allocation12], 1024
    $region53: #{sensor_nn_forward.1} parent=1 // pred_fallthru
      _
    // Predicated region
    $region54: #{sensor_nn_forward.1} parent=1 // pred_check
      _
    $region55: #{sensor_nn_forward.1} parent=1 // pred_check_branch
      %112 = sbr.rel (0) target = $region57
    $region56: #{sensor_nn_forward.1} parent=1 // pred_region
      %113 = dma.done [#allocation12], 16
    $region57: #{sensor_nn_forward.1} parent=1 // pred_fallthru
      _
    %v115 = vld [vmem:[#allocation2] sm:$0xff]
    %v116 = vld [vmem:[#allocation2 + $0x8] sm:$0xf]
    %v117 = vld [vmem:[#allocation5] sm:$0xff]
    %v118 = vld [vmem:[#allocation5 + $0x8] sm:$0xff]
    %v119 = vld [vmem:[#allocation5 + $0x10] sm:$0xff]
    %v120 = vld [vmem:[#allocation5 + $0x18] sm:$0xff]
    %v121 = vld [vmem:[#allocation5 + $0x20] sm:$0xff]
    %v122 = vld [vmem:[#allocation5 + $0x28] sm:$0xff]
    %v123 = vld [vmem:[#allocation5 + $0x30] sm:$0xff]
    %v124 = vld [vmem:[#allocation5 + $0x38] sm:$0xff]
    %v125 = vld [vmem:[#allocation5 + $0x40] sm:$0xff]
    %v126 = vld [vmem:[#allocation5 + $0x48] sm:$0xff]
    %v127 = vld [vmem:[#allocation5 + $0x50] sm:$0xff]
    %v128 = vld [vmem:[#allocation5 + $0x58] sm:$0xff]
    %v129 = vld [vmem:[#allocation5 + $0x60] sm:$0xff]
    %v130 = vld [vmem:[#allocation5 + $0x68] sm:$0xff]
    %v131 = vld [vmem:[#allocation5 + $0x70] sm:$0xff]
    %v132 = vld [vmem:[#allocation5 + $0x78] sm:$0xff]
    %v133 = vld [vmem:[#allocation5 + $0x80] sm:$0xff]
    %v134 = vld [vmem:[#allocation5 + $0x88] sm:$0xff]
    %v135 = vld [vmem:[#allocation5 + $0x90] sm:$0xff]
    %v136 = vld [vmem:[#allocation5 + $0x98] sm:$0xff]
    %v137 = vld [vmem:[#allocation5 + $0xa0] sm:$0xff]
    %v138 = vld [vmem:[#allocation5 + $0xa8] sm:$0xff]
    %v139 = vld [vmem:[#allocation5 + $0xb0] sm:$0xff]
    %v140 = vld [vmem:[#allocation5 + $0xb8] sm:$0xff]
    %v141 = vld [vmem:[#allocation5 + $0xc0] sm:$0xff]
    %v142 = vld [vmem:[#allocation5 + $0xc8] sm:$0xff]
    %v143 = vld [vmem:[#allocation5 + $0xd0] sm:$0xff]
    %v144 = vld [vmem:[#allocation5 + $0xd8] sm:$0xff]
    %v145 = vld [vmem:[#allocation5 + $0xe0] sm:$0xff]
    %v146 = vld [vmem:[#allocation5 + $0xe8] sm:$0xff]
    %v147 = vld [vmem:[#allocation5 + $0xf0] sm:$0xff]
    %v148 = vld [vmem:[#allocation5 + $0xf8] sm:$0xff]
    %v149 = vld [vmem:[#allocation5 + $0x100] sm:$0xff]
    %v150 = vld [vmem:[#allocation5 + $0x108] sm:$0xff]
    %v151 = vld [vmem:[#allocation5 + $0x110] sm:$0xff]
    %v152 = vld [vmem:[#allocation5 + $0x118] sm:$0xff]
    %v153 = vld [vmem:[#allocation5 + $0x120] sm:$0xff]
    %v154 = vld [vmem:[#allocation5 + $0x128] sm:$0xff]
    %v155 = vld [vmem:[#allocation5 + $0x130] sm:$0xff]
    %v156 = vld [vmem:[#allocation5 + $0x138] sm:$0xff]
    %v157 = vld [vmem:[#allocation5 + $0x140] sm:$0xff]
    %v158 = vld [vmem:[#allocation5 + $0x148] sm:$0xff]
    %v159 = vld [vmem:[#allocation5 + $0x150] sm:$0xff]
    %v160 = vld [vmem:[#allocation5 + $0x158] sm:$0xff]
    %v161 = vld [vmem:[#allocation5 + $0x160] sm:$0xff]
    %v162 = vld [vmem:[#allocation5 + $0x168] sm:$0xff]
    %v163 = vld [vmem:[#allocation5 + $0x170] sm:$0xff]
    %v164 = vld [vmem:[#allocation5 + $0x178] sm:$0xff]
    %v165 = vld [vmem:[#allocation7] sm:$0x3]
    %v167 = vlaneseq
    %v168 = vshrl.u32 %v167, 7
    %v169 = vsub.s32 0, %v168
    %v170 = vrot.slane %v165, %v169
    %v171 = vlaneseq
    %v172 = vshrl.u32 %v171, 7
    %v173 = vsub.s32 1, %v172
    %v174 = vrot.slane %v165, %v173
    %v179 = vunpack.c.l.b16 %v115
    %v180 = vunpack.c.h.b16 %v115
    %v181 = vunpack.c.l.b16 %v116
    %v182 = vpack.c.b16 %v179, %v179
    %v183 = vpack.c.b16 %v180, %v180
    %v184 = vpack.c.b16 %v181, %v181
    %v236 = vunpack.c.l.b16 %v117
    %v237 = vunpack.c.h.b16 %v117
    %v238 = vunpack.c.l.b16 %v118
    %v239 = vunpack.c.h.b16 %v118
    %v240 = vunpack.c.l.b16 %v119
    %v241 = vunpack.c.h.b16 %v119
    %v242 = vunpack.c.l.b16 %v120
    %v243 = vunpack.c.h.b16 %v120
    %v244 = vunpack.c.l.b16 %v121
    %v245 = vunpack.c.h.b16 %v121
    %v246 = vunpack.c.l.b16 %v122
    %v247 = vunpack.c.h.b16 %v122
    %v248 = vunpack.c.l.b16 %v123
    %v249 = vunpack.c.h.b16 %v123
    %v250 = vunpack.c.l.b16 %v124
    %v251 = vunpack.c.h.b16 %v124
    %v252 = vunpack.c.l.b16 %v125
    %v253 = vunpack.c.h.b16 %v125
    %v254 = vunpack.c.l.b16 %v126
    %v255 = vunpack.c.h.b16 %v126
    %v256 = vunpack.c.l.b16 %v127
    %v257 = vunpack.c.h.b16 %v127
    %v258 = vunpack.c.l.b16 %v128
    %v259 = vunpack.c.h.b16 %v128
    %v260 = vunpack.c.l.b16 %v129
    %v261 = vunpack.c.h.b16 %v129
    %v262 = vunpack.c.l.b16 %v130
    %v263 = vunpack.c.h.b16 %v130
    %v264 = vunpack.c.l.b16 %v131
    %v265 = vunpack.c.h.b16 %v131
    %v266 = vunpack.c.l.b16 %v132
    %v267 = vunpack.c.h.b16 %v132
    %v268 = vunpack.c.l.b16 %v133
    %v269 = vunpack.c.h.b16 %v133
    %v270 = vunpack.c.l.b16 %v134
    %v271 = vunpack.c.h.b16 %v134
    %v272 = vunpack.c.l.b16 %v135
    %v273 = vunpack.c.h.b16 %v135
    %v274 = vunpack.c.l.b16 %v136
    %v275 = vunpack.c.h.b16 %v136
    %v276 = vunpack.c.l.b16 %v137
    %v277 = vunpack.c.h.b16 %v137
    %v278 = vunpack.c.l.b16 %v138
    %v279 = vunpack.c.h.b16 %v138
    %v280 = vunpack.c.l.b16 %v139
    %v281 = vunpack.c.h.b16 %v139
    %v282 = vunpack.c.l.b16 %v140
    %v283 = vunpack.c.h.b16 %v140
    %v284 = vunpack.c.l.b16 %v141
    %v285 = vunpack.c.h.b16 %v141
    %v286 = vunpack.c.l.b16 %v142
    %v287 = vunpack.c.h.b16 %v142
    %v288 = vunpack.c.l.b16 %v143
    %v289 = vunpack.c.h.b16 %v143
    %v290 = vunpack.c.l.b16 %v144
    %v291 = vunpack.c.h.b16 %v144
    %v292 = vunpack.c.l.b16 %v145
    %v293 = vunpack.c.h.b16 %v145
    %v294 = vunpack.c.l.b16 %v146
    %v295 = vunpack.c.h.b16 %v146
    %v296 = vunpack.c.l.b16 %v147
    %v297 = vunpack.c.h.b16 %v147
    %v298 = vunpack.c.l.b16 %v148
    %v299 = vunpack.c.h.b16 %v148
    %v300 = vunpack.c.l.b16 %v149
    %v301 = vunpack.c.h.b16 %v149
    %v302 = vunpack.c.l.b16 %v150
    %v303 = vunpack.c.h.b16 %v150
    %v304 = vunpack.c.l.b16 %v151
    %v305 = vunpack.c.h.b16 %v151
    %v306 = vunpack.c.l.b16 %v152
    %v307 = vunpack.c.h.b16 %v152
    %v308 = vunpack.c.l.b16 %v153
    %v309 = vunpack.c.h.b16 %v153
    %v310 = vunpack.c.l.b16 %v154
    %v311 = vunpack.c.h.b16 %v154
    %v312 = vunpack.c.l.b16 %v155
    %v313 = vunpack.c.h.b16 %v155
    %v314 = vunpack.c.l.b16 %v156
    %v315 = vunpack.c.h.b16 %v156
    %v316 = vunpack.c.l.b16 %v157
    %v317 = vunpack.c.h.b16 %v157
    %v318 = vunpack.c.l.b16 %v158
    %v319 = vunpack.c.h.b16 %v158
    %v320 = vunpack.c.l.b16 %v159
    %v321 = vunpack.c.h.b16 %v159
    %v322 = vunpack.c.l.b16 %v160
    %v323 = vunpack.c.h.b16 %v160
    %v324 = vunpack.c.l.b16 %v161
    %v325 = vunpack.c.h.b16 %v161
    %v326 = vunpack.c.l.b16 %v162
    %v327 = vunpack.c.h.b16 %v162
    %v328 = vunpack.c.l.b16 %v163
    %v329 = vunpack.c.h.b16 %v163
    %v330 = vunpack.c.l.b16 %v164
    %v331 = vunpack.c.h.b16 %v164
    %v332 = vpack.c.b16 %v238, %v236
    %v333 = vpack.c.b16 %v239, %v237
    %v334 = vpack.c.b16 %v242, %v240
    %v335 = vpack.c.b16 %v243, %v241
    %v336 = vpack.c.b16 %v246, %v244
    %v337 = vpack.c.b16 %v247, %v245
    %v338 = vpack.c.b16 %v250, %v248
    %v339 = vpack.c.b16 %v251, %v249
    %v340 = vpack.c.b16 %v254, %v252
    %v341 = vpack.c.b16 %v255, %v253
    %v342 = vpack.c.b16 %v258, %v256
    %v343 = vpack.c.b16 %v259, %v257
    %v344 = vpack.c.b16 %v262, %v260
    %v345 = vpack.c.b16 %v263, %v261
    %v346 = vpack.c.b16 %v266, %v264
    %v347 = vpack.c.b16 %v267, %v265
    %v348 = vpack.c.b16 %v270, %v268
    %v349 = vpack.c.b16 %v271, %v269
    %v350 = vpack.c.b16 %v274, %v272
    %v351 = vpack.c.b16 %v275, %v273
    %v352 = vpack.c.b16 %v278, %v276
    %v353 = vpack.c.b16 %v279, %v277
    %v354 = vpack.c.b16 %v282, %v280
    %v355 = vpack.c.b16 %v283, %v281
    %v356 = vpack.c.b16 %v286, %v284
    %v357 = vpack.c.b16 %v287, %v285
    %v358 = vpack.c.b16 %v290, %v288
    %v359 = vpack.c.b16 %v291, %v289
    %v360 = vpack.c.b16 %v294, %v292
    %v361 = vpack.c.b16 %v295, %v293
    %v362 = vpack.c.b16 %v298, %v296
    %v363 = vpack.c.b16 %v299, %v297
    %v364 = vpack.c.b16 %v302, %v300
    %v365 = vpack.c.b16 %v303, %v301
    %v366 = vpack.c.b16 %v306, %v304
    %v367 = vpack.c.b16 %v307, %v305
    %v368 = vpack.c.b16 %v310, %v308
    %v369 = vpack.c.b16 %v311, %v309
    %v370 = vpack.c.b16 %v314, %v312
    %v371 = vpack.c.b16 %v315, %v313
    %v372 = vpack.c.b16 %v318, %v316
    %v373 = vpack.c.b16 %v319, %v317
    %v374 = vpack.c.b16 %v322, %v320
    %v375 = vpack.c.b16 %v323, %v321
    %v376 = vpack.c.b16 %v326, %v324
    %v377 = vpack.c.b16 %v327, %v325
    %v378 = vpack.c.b16 %v330, %v328
    %v379 = vpack.c.b16 %v331, %v329
    %428 = vmatprep.subr.bf16.mxu0 %v333
    %429 = vmatpush1.bf16.msra.mxu0 %v332
    %430 = vmatprep.subr.bf16.mxu0 %v335
    %431 = vmatpush1.bf16.msra.mxu0 %v334
    %432 = vmatprep.subr.bf16.mxu0 %v337
    %433 = vmatpush1.bf16.msra.mxu0 %v336
    %434 = vmatprep.subr.bf16.mxu0 %v339
    %435 = vmatpush1.bf16.msra.mxu0 %v338
    %436 = vmatprep.subr.bf16.mxu0 %v341
    %437 = vmatpush1.bf16.msra.mxu0 %v340
    %438 = vmatprep.subr.bf16.mxu0 %v343
    %439 = vmatpush1.bf16.msra.mxu0 %v342
    %440 = vmatprep.subr.bf16.mxu0 %v345
    %441 = vmatpush1.bf16.msra.mxu0 %v344
    %442 = vmatprep.subr.bf16.mxu0 %v347
    %443 = vmatpush1.bf16.msra.mxu0 %v346
    %444 = vmatprep.subr.bf16.mxu0 %v349
    %445 = vmatpush1.bf16.msra.mxu0 %v348
    %446 = vmatprep.subr.bf16.mxu0 %v351
    %447 = vmatpush1.bf16.msra.mxu0 %v350
    %448 = vmatprep.subr.bf16.mxu0 %v353
    %449 = vmatpush1.bf16.msra.mxu0 %v352
    %450 = vmatprep.subr.bf16.mxu0 %v355
    %451 = vmatpush1.bf16.msra.mxu0 %v354
    %452 = vmatprep.subr.bf16.mxu0 %v357
    %453 = vmatpush1.bf16.msra.mxu0 %v356
    %454 = vmatprep.subr.bf16.mxu0 %v359
    %455 = vmatpush1.bf16.msra.mxu0 %v358
    %456 = vmatprep.subr.bf16.mxu0 %v361
    %457 = vmatpush1.bf16.msra.mxu0 %v360
    %458 = vmatprep.subr.bf16.mxu0 %v363
    %459 = vmatpush1.bf16.msra.mxu0 %v362
    %460 = vmatprep.mubr.bf16.mxu0 %v183
    %461 = vmatmul.mubr.bf16.gmra.mrb[0].mxu0 %v182
    %v462 = vpop.f32.mrb[0].mxu0
    %v463 = vadd.f32 %v170, %v462
    %v464 = vpop.f32.mrb[0].mxu0
    %v465 = vadd.f32 %v174, %v464
    %v466 = vpop.f32.mrb[0].mxu0
    %v467 = vpop.f32.mrb[0].mxu0
    %468 = vdwg.mxu0
    %469 = vmatprep.subr.bf16.mxu0 %v365
    %470 = vmatpush1.bf16.msra.mxu0 %v364
    %471 = vmatprep.subr.bf16.mxu0 %v367
    %472 = vmatpush1.bf16.msra.mxu0 %v366
    %473 = vmatprep.subr.bf16.mxu0 %v369
    %474 = vmatpush1.bf16.msra.mxu0 %v368
    %475 = vmatprep.subr.bf16.mxu0 %v371
    %476 = vmatpush1.bf16.msra.mxu0 %v370
    %477 = vmatprep.subr.bf16.mxu0 %v373
    %478 = vmatpush1.bf16.msra.mxu0 %v372
    %479 = vmatprep.subr.bf16.mxu0 %v375
    %480 = vmatpush1.bf16.msra.mxu0 %v374
    %481 = vmatprep.subr.bf16.mxu0 %v377
    %482 = vmatpush1.bf16.msra.mxu0 %v376
    %483 = vmatprep.subr.bf16.mxu0 %v379
    %484 = vmatpush1.bf16.msra.mxu0 %v378
    %485 = vmatprep.subr.bf16.mxu0 0
    %486 = vmatpush1.bf16.msra.mxu0 0
    %487 = vmatprep.subr.bf16.mxu0 0
    %488 = vmatpush1.bf16.msra.mxu0 0
    %489 = vmatprep.subr.bf16.mxu0 0
    %490 = vmatpush1.bf16.msra.mxu0 0
    %491 = vmatprep.subr.bf16.mxu0 0
    %492 = vmatpush1.bf16.msra.mxu0 0
    %493 = vmatprep.subr.bf16.mxu0 0
    %494 = vmatpush1.bf16.msra.mxu0 0
    %495 = vmatprep.subr.bf16.mxu0 0
    %496 = vmatpush1.bf16.msra.mxu0 0
    %497 = vmatprep.subr.bf16.mxu0 0
    %498 = vmatpush1.bf16.msra.mxu0 0
    %499 = vmatprep.subr.bf16.mxu0 0
    %500 = vmatpush1.bf16.msra.mxu0 0
    %501 = vmatprep.mubr.bf16.mxu0 0
    %502 = vmatmul.mubr.bf16.gmra.mrb[0].mxu0 %v184
    %v503 = vpop.f32.mrb[0].mxu0
    %v504 = vadd.f32 %v463, %v503
    %v505 = vpop.f32.mrb[0].mxu0
    %v506 = vadd.f32 %v465, %v505
    %v507 = vpop.f32.mrb[0].mxu0
    %v508 = vpop.f32.mrb[0].mxu0
    %509 = vdwg.mxu0
    %v510 = vmax.f32 %v504, 0.0
    %v511 = vmax.f32 %v506, 0.0
    %v512 = vpack.c.bf16 %v510, %v510
    %v513 = vpack.c.bf16 %v511, %v511
    %v514 = vld [vmem:[#allocation8] sm:$0xf]
    %v515 = vld [vmem:[#allocation8 + $0x4] sm:$0xf]
    %v516 = vld [vmem:[#allocation8 + $0x8] sm:$0xf]
    %v517 = vld [vmem:[#allocation8 + $0xc] sm:$0xf]
    %v518 = vld [vmem:[#allocation8 + $0x10] sm:$0xf]
    %v519 = vld [vmem:[#allocation8 + $0x14] sm:$0xf]
    %v520 = vld [vmem:[#allocation8 + $0x18] sm:$0xf]
    %v521 = vld [vmem:[#allocation8 + $0x1c] sm:$0xf]
    %v522 = vld [vmem:[#allocation8 + $0x20] sm:$0xf]
    %v523 = vld [vmem:[#allocation8 + $0x24] sm:$0xf]
    %v524 = vld [vmem:[#allocation8 + $0x28] sm:$0xf]
    %v525 = vld [vmem:[#allocation8 + $0x2c] sm:$0xf]
    %v526 = vld [vmem:[#allocation8 + $0x30] sm:$0xf]
    %v527 = vld [vmem:[#allocation8 + $0x34] sm:$0xf]
    %v528 = vld [vmem:[#allocation8 + $0x38] sm:$0xf]
    %v529 = vld [vmem:[#allocation8 + $0x3c] sm:$0xf]
    %v530 = vld [vmem:[#allocation8 + $0x40] sm:$0xf]
    %v531 = vld [vmem:[#allocation8 + $0x44] sm:$0xf]
    %v532 = vld [vmem:[#allocation8 + $0x48] sm:$0xf]
    %v533 = vld [vmem:[#allocation8 + $0x4c] sm:$0xf]
    %v534 = vld [vmem:[#allocation8 + $0x50] sm:$0xf]
    %v535 = vld [vmem:[#allocation8 + $0x54] sm:$0xf]
    %v536 = vld [vmem:[#allocation8 + $0x58] sm:$0xf]
    %v537 = vld [vmem:[#allocation8 + $0x5c] sm:$0xf]
    %v538 = vld [vmem:[#allocation8 + $0x60] sm:$0xf]
    %v539 = vld [vmem:[#allocation8 + $0x64] sm:$0xf]
    %v540 = vld [vmem:[#allocation8 + $0x68] sm:$0xf]
    %v541 = vld [vmem:[#allocation8 + $0x6c] sm:$0xf]
    %v542 = vld [vmem:[#allocation8 + $0x70] sm:$0xf]
    %v543 = vld [vmem:[#allocation8 + $0x74] sm:$0xf]
    %v544 = vld [vmem:[#allocation8 + $0x78] sm:$0xf]
    %v545 = vld [vmem:[#allocation8 + $0x7c] sm:$0xf]
    %v546 = vld [vmem:[#allocation10] sm:$0x1]
    %v548 = vlaneseq
    %v549 = vshrl.u32 %v548, 7
    %v550 = vsub.s32 0, %v549
    %v551 = vrot.slane %v546, %v550
    %v585 = vunpack.c.l.b16 %v514
    %v586 = vunpack.c.l.b16 %v515
    %v587 = vunpack.c.l.b16 %v516
    %v588 = vunpack.c.l.b16 %v517
    %v589 = vunpack.c.l.b16 %v518
    %v590 = vunpack.c.l.b16 %v519
    %v591 = vunpack.c.l.b16 %v520
    %v592 = vunpack.c.l.b16 %v521
    %v593 = vunpack.c.l.b16 %v522
    %v594 = vunpack.c.l.b16 %v523
    %v595 = vunpack.c.l.b16 %v524
    %v596 = vunpack.c.l.b16 %v525
    %v597 = vunpack.c.l.b16 %v526
    %v598 = vunpack.c.l.b16 %v527
    %v599 = vunpack.c.l.b16 %v528
    %v600 = vunpack.c.l.b16 %v529
    %v601 = vunpack.c.l.b16 %v530
    %v602 = vunpack.c.l.b16 %v531
    %v603 = vunpack.c.l.b16 %v532
    %v604 = vunpack.c.l.b16 %v533
    %v605 = vunpack.c.l.b16 %v534
    %v606 = vunpack.c.l.b16 %v535
    %v607 = vunpack.c.l.b16 %v536
    %v608 = vunpack.c.l.b16 %v537
    %v609 = vunpack.c.l.b16 %v538
    %v610 = vunpack.c.l.b16 %v539
    %v611 = vunpack.c.l.b16 %v540
    %v612 = vunpack.c.l.b16 %v541
    %v613 = vunpack.c.l.b16 %v542
    %v614 = vunpack.c.l.b16 %v543
    %v615 = vunpack.c.l.b16 %v544
    %v616 = vunpack.c.l.b16 %v545
    %v617 = vpack.c.b16 %v586, %v585
    %v618 = vpack.c.b16 %v588, %v587
    %v619 = vpack.c.b16 %v590, %v589
    %v620 = vpack.c.b16 %v592, %v591
    %v621 = vpack.c.b16 %v594, %v593
    %v622 = vpack.c.b16 %v596, %v595
    %v623 = vpack.c.b16 %v598, %v597
    %v624 = vpack.c.b16 %v600, %v599
    %v625 = vpack.c.b16 %v602, %v601
    %v626 = vpack.c.b16 %v604, %v603
    %v627 = vpack.c.b16 %v606, %v605
    %v628 = vpack.c.b16 %v608, %v607
    %v629 = vpack.c.b16 %v610, %v609
    %v630 = vpack.c.b16 %v612, %v611
    %v631 = vpack.c.b16 %v614, %v613
    %v632 = vpack.c.b16 %v616, %v615
    %649 = vmatprep.subr.bf16.mxu0 0
    %650 = vmatpush1.bf16.msra.mxu0 %v617
    %651 = vmatprep.subr.bf16.mxu0 0
    %652 = vmatpush1.bf16.msra.mxu0 %v618
    %653 = vmatprep.subr.bf16.mxu0 0
    %654 = vmatpush1.bf16.msra.mxu0 %v619
    %655 = vmatprep.subr.bf16.mxu0 0
    %656 = vmatpush1.bf16.msra.mxu0 %v620
    %657 = vmatprep.subr.bf16.mxu0 0
    %658 = vmatpush1.bf16.msra.mxu0 %v621
    %659 = vmatprep.subr.bf16.mxu0 0
    %660 = vmatpush1.bf16.msra.mxu0 %v622
    %661 = vmatprep.subr.bf16.mxu0 0
    %662 = vmatpush1.bf16.msra.mxu0 %v623
    %663 = vmatprep.subr.bf16.mxu0 0
    %664 = vmatpush1.bf16.msra.mxu0 %v624
    %665 = vmatprep.subr.bf16.mxu0 0
    %666 = vmatpush1.bf16.msra.mxu0 %v625
    %667 = vmatprep.subr.bf16.mxu0 0
    %668 = vmatpush1.bf16.msra.mxu0 %v626
    %669 = vmatprep.subr.bf16.mxu0 0
    %670 = vmatpush1.bf16.msra.mxu0 %v627
    %671 = vmatprep.subr.bf16.mxu0 0
    %672 = vmatpush1.bf16.msra.mxu0 %v628
    %673 = vmatprep.subr.bf16.mxu0 0
    %674 = vmatpush1.bf16.msra.mxu0 %v629
    %675 = vmatprep.subr.bf16.mxu0 0
    %676 = vmatpush1.bf16.msra.mxu0 %v630
    %677 = vmatprep.subr.bf16.mxu0 0
    %678 = vmatpush1.bf16.msra.mxu0 %v631
    %679 = vmatprep.subr.bf16.mxu0 0
    %680 = vmatpush1.bf16.msra.mxu0 %v632
    %681 = vmatprep.mubr.bf16.mxu0 %v513
    %682 = vmatmul.mubr.bf16.gmra.mrb[0].mxu0 %v512
    %v683 = vpop.f32.mrb[0].mxu0
    %v684 = vadd.f32 %v551, %v683
    %v685 = vpop.f32.mrb[0].mxu0
    %v686 = vpop.f32.mrb[0].mxu0
    %v687 = vpop.f32.mrb[0].mxu0
    %688 = vdwg.mxu0
    %v689 = vmax.f32 %v684, 0.0
    %v690 = vpack.c.bf16 %v689, %v689
    %v691 = vld [vmem:[#allocation11] sm:$0xf]
    %v692 = vld [vmem:[#allocation11 + $0x4] sm:$0xf]
    %v693 = vld [vmem:[#allocation11 + $0x8] sm:$0xf]
    %v694 = vld [vmem:[#allocation11 + $0xc] sm:$0xf]
    %v695 = vld [vmem:[#allocation11 + $0x10] sm:$0xf]
    %v696 = vld [vmem:[#allocation11 + $0x14] sm:$0xf]
    %v697 = vld [vmem:[#allocation11 + $0x18] sm:$0xf]
    %v698 = vld [vmem:[#allocation11 + $0x1c] sm:$0xf]
    %v699 = vld [vmem:[#allocation11 + $0x20] sm:$0xf]
    %v700 = vld [vmem:[#allocation11 + $0x24] sm:$0xf]
    %v701 = vld [vmem:[#allocation11 + $0x28] sm:$0xf]
    %v702 = vld [vmem:[#allocation11 + $0x2c] sm:$0xf]
    %v703 = vld [vmem:[#allocation11 + $0x30] sm:$0xf]
    %v704 = vld [vmem:[#allocation11 + $0x34] sm:$0xf]
    %v705 = vld [vmem:[#allocation11 + $0x38] sm:$0xf]
    %v706 = vld [vmem:[#allocation11 + $0x3c] sm:$0xf]
    %v707 = vld [vmem:[#allocation13] sm:$0x1]
    %v709 = vlaneseq
    %v710 = vshrl.u32 %v709, 7
    %v711 = vsub.s32 0, %v710
    %v712 = vrot.slane %v707, %v711
    %v730 = vunpack.c.l.b16 %v691
    %v731 = vunpack.c.l.b16 %v692
    %v732 = vunpack.c.l.b16 %v693
    %v733 = vunpack.c.l.b16 %v694
    %v734 = vunpack.c.l.b16 %v695
    %v735 = vunpack.c.l.b16 %v696
    %v736 = vunpack.c.l.b16 %v697
    %v737 = vunpack.c.l.b16 %v698
    %v738 = vunpack.c.l.b16 %v699
    %v739 = vunpack.c.l.b16 %v700
    %v740 = vunpack.c.l.b16 %v701
    %v741 = vunpack.c.l.b16 %v702
    %v742 = vunpack.c.l.b16 %v703
    %v743 = vunpack.c.l.b16 %v704
    %v744 = vunpack.c.l.b16 %v705
    %v745 = vunpack.c.l.b16 %v706
    %v746 = vpack.c.b16 %v731, %v730
    %v747 = vpack.c.b16 %v733, %v732
    %v748 = vpack.c.b16 %v735, %v734
    %v749 = vpack.c.b16 %v737, %v736
    %v750 = vpack.c.b16 %v739, %v738
    %v751 = vpack.c.b16 %v741, %v740
    %v752 = vpack.c.b16 %v743, %v742
    %v753 = vpack.c.b16 %v745, %v744
    %762 = vmatprep.subr.bf16.mxu0 0
    %763 = vmatpush1.bf16.msra.mxu0 %v746
    %764 = vmatprep.subr.bf16.mxu0 0
    %765 = vmatpush1.bf16.msra.mxu0 %v747
    %766 = vmatprep.subr.bf16.mxu0 0
    %767 = vmatpush1.bf16.msra.mxu0 %v748
    %768 = vmatprep.subr.bf16.mxu0 0
    %769 = vmatpush1.bf16.msra.mxu0 %v749
    %770 = vmatprep.subr.bf16.mxu0 0
    %771 = vmatpush1.bf16.msra.mxu0 %v750
    %772 = vmatprep.subr.bf16.mxu0 0
    %773 = vmatpush1.bf16.msra.mxu0 %v751
    %774 = vmatprep.subr.bf16.mxu0 0
    %775 = vmatpush1.bf16.msra.mxu0 %v752
    %776 = vmatprep.subr.bf16.mxu0 0
    %777 = vmatpush1.bf16.msra.mxu0 %v753
    %778 = vmatprep.subr.bf16.mxu0 0
    %779 = vmatpush1.bf16.msra.mxu0 0
    %780 = vmatprep.subr.bf16.mxu0 0
    %781 = vmatpush1.bf16.msra.mxu0 0
    %782 = vmatprep.subr.bf16.mxu0 0
    %783 = vmatpush1.bf16.msra.mxu0 0
    %784 = vmatprep.subr.bf16.mxu0 0
    %785 = vmatpush1.bf16.msra.mxu0 0
    %786 = vmatprep.subr.bf16.mxu0 0
    %787 = vmatpush1.bf16.msra.mxu0 0
    %788 = vmatprep.subr.bf16.mxu0 0
    %789 = vmatpush1.bf16.msra.mxu0 0
    %790 = vmatprep.subr.bf16.mxu0 0
    %791 = vmatpush1.bf16.msra.mxu0 0
    %792 = vmatprep.subr.bf16.mxu0 0
    %793 = vmatpush1.bf16.msra.mxu0 0
    %794 = vmatprep.mubr.bf16.mxu0 0
    %795 = vmatmul.mubr.bf16.gmra.mrb[0].mxu0 %v690
    %v796 = vpop.f32.mrb[0].mxu0
    %v797 = vadd.f32 %v712, %v796
    %v798 = vpop.f32.mrb[0].mxu0
    %v799 = vpop.f32.mrb[0].mxu0
    %v800 = vpop.f32.mrb[0].mxu0
    %801 = vdwg.mxu0
    %802 = vst [vmem:[#allocation14] sm:$0xff] %v797
    // Predicated region
    $region58: #{sensor_nn_forward.1} parent=1 // pred_check
      _
    $region59: #{sensor_nn_forward.1} parent=1 // pred_check_branch
      %804 = sbr.rel (0) target = $region61
    $region60: #{sensor_nn_forward.1} parent=1 // pred_region
      %s806 = ssub.s32 128, 128
      %807 = vsyncadd [#allocation4], %s806
      %s809 = sshll.u32 [#allocation14], 4
      %s810 = int_to_ptr.vmem [resolvable:$true] %s809
      %812 = dma.vmem_to_hbm [thread:$0]  %s810, 128, %s7, [#allocation4]
    $region61: #{sensor_nn_forward.1} parent=1 // pred_fallthru
      _
    // Predicated region
    $region62: #{sensor_nn_forward.1} parent=1 // pred_check
      _
    $region63: #{sensor_nn_forward.1} parent=1 // pred_check_branch
      %814 = sbr.rel (0) target = $region65
    $region64: #{sensor_nn_forward.1} parent=1 // pred_region
      %815 = dma.done [#allocation4], 128
    $region65: #{sensor_nn_forward.1} parent=1 // pred_fallthru
      _
    %816 = vsyncpa [#allocation3], 1
    %817 = vsyncpa [#allocation6], 1
    %818 = vsyncpa [#allocation9], 1
    %819 = vsyncpa [#allocation12], 1
    %820 = vsyncpa [#allocation4], 1

</llo_original>
